<compile_context>
chip_gen: v6e
topology: v6e:2x2x1
jax: 0.10.0
libtpu: 0.0.40
codegen_flags: <defaults>
</compile_context>

<pallas_src>
import functools
import math

import jax
import jax.numpy as jnp
from jax import lax
from jax.experimental import pallas as pl
from jax.experimental.pallas import tpu as pltpu


def _qhead_kernel(x_ref, w_ref, b_ref, o_ref):
    # x_ref: (TB, in_c, TSL)  channels-first slab of x (permute fused here)
    # w_ref: (in_c, q_c)      VMEM-resident transposed Linear weight
    # b_ref: (1, q_c)         VMEM-resident bias
    # o_ref: (TB, TSL, q_c)   true-width output tile (no lane padding in HBM)
    w = w_ref[...]
    b = b_ref[...]
    # TB is a small static constant -> unrolled 2-D transposed-LHS matmuls
    # (contract in_c against in_c), which the MXU takes natively.
    for i in range(x_ref.shape[0]):
        acc = lax.dot_general(
            x_ref[i], w,
            dimension_numbers=(((0,), (0,)), ((), ())),
            preferred_element_type=jnp.float32,
        )
        o_ref[i] = (acc + b).astype(o_ref.dtype)


@functools.partial(jax.jit, static_argnames=("tsl_max",))
def quantization_head_forward(x, weight, bias, *, tsl_max=1024):
    """x: (bs, in_c, sl); weight: (q_c, in_c); bias: (q_c,).

    Returns (bs, sl, q_c), same math as PyTorch QuantizationHead.forward.
    """
    bs, in_c, sl = x.shape
    q_c = weight.shape[0]
    out_dtype = jnp.promote_types(x.dtype, weight.dtype)

    w = weight.T                      # (in_c, q_c); fused inside the jit
    b = bias.reshape(1, q_c)

    # Sequence tile: full sl when short (full-dim block is always legal),
    # otherwise a 128-multiple tile.  Double-buffered x/out tiles stay a few
    # MiB at tsl=1024; set vmem_limit_bytes explicitly if pushing to 2048.
    tsl = sl if sl <= tsl_max else tsl_max
    # When tsl underfills the MXU M dim / the grid is tiny, fold several batch
    # rows into one grid step to amortize per-step overhead.
    tb = 1 if tsl >= 128 else min(bs, 8)
    grid = (pl.cdiv(bs, tb), pl.cdiv(sl, tsl))

    cost = pl.CostEstimate(
        flops=2 * bs * sl * in_c * q_c,
        transcendentals=0,
        bytes_accessed=(x.size * x.dtype.itemsize
                        + w.size * w.dtype.itemsize
                        + b.size * b.dtype.itemsize
                        + bs * sl * q_c * jnp.dtype(out_dtype).itemsize),
    )

    return pl.pallas_call(
        _qhead_kernel,
        out_shape=jax.ShapeDtypeStruct((bs, sl, q_c), out_dtype),
        grid_spec=pltpu.PrefetchScalarGridSpec(
            num_scalar_prefetch=0,
            grid=grid,
            in_specs=[
                # x slab: batch tile bi, all channels, seq tile si.
                pl.BlockSpec((tb, in_c, tsl), lambda bi, si: (bi, 0, si)),
                # weight / bias: constant index -> fetched once, VMEM-resident.
                pl.BlockSpec((in_c, q_c), lambda bi, si: (0, 0)),
                pl.BlockSpec((1, q_c), lambda bi, si: (0, 0)),
            ],
            out_specs=pl.BlockSpec((tb, tsl, q_c), lambda bi, si: (bi, si, 0)),
        ),
        compiler_params=pltpu.CompilerParams(
            # No reduction axes; both axes independent -> megacore sharding on
            # v7x, no-op on single-TC v5e/v6e.
            dimension_semantics=("parallel", "parallel"),
        ),
        cost_estimate=cost,
    )(x, w, b)


def init_params(key, in_c, q_c):
    """Deterministic init matching nn.Linear's default (uniform +/- 1/sqrt(in_c))."""
    kw, kb = jax.random.split(key)
    bound = 1.0 / math.sqrt(in_c)
    weight = jax.random.uniform(kw, (q_c, in_c), jnp.float32, -bound, bound)
    bias = jax.random.uniform(kb, (q_c,), jnp.float32, -bound, bound)
    return weight, bias


def _reference(x, weight, bias):
    # Same math as the PyTorch forward: permute(0, 2, 1) then Linear.
    return jnp.einsum("bcs,qc->bsq", x, weight) + bias


if __name__ == "__main__":
    quantization_channels = 32
    bs, in_c, sl = 2, 32, 16

    key = jax.random.PRNGKey(0)
    kx, kp = jax.random.split(key)
    x = jax.random.normal(kx, (bs, in_c, sl), jnp.float32)
    weight, bias = init_params(kp, in_c, quantization_channels)

    # Short-sequence path: tsl = sl = 16, batch folded (tb = 2), grid = (1, 1).
    out = jax.block_until_ready(quantization_head_forward(x, weight, bias))
    ref = _reference(x, weight, bias)
    assert out.shape == (bs, sl, quantization_channels), out.shape
    assert jnp.allclose(out, ref, atol=1e-5, rtol=1e-5)

    # Long-sequence path: tsl = 1024, grid = (2, 2), exercises pipelining.
    sl_big = 2048
    x_big = jax.random.normal(jax.random.PRNGKey(1), (bs, in_c, sl_big), jnp.float32)
    out_big = jax.block_until_ready(quantization_head_forward(x_big, weight, bias))
    ref_big = _reference(x_big, weight, bias)
    assert out_big.shape == (bs, sl_big, quantization_channels), out_big.shape
    assert jnp.allclose(out_big, ref_big, atol=1e-5, rtol=1e-5)

    # bf16 end-to-end (f32 accumulate inside the kernel, bf16 in/out HBM traffic).
    xb = x_big.astype(jnp.bfloat16)
    wb = weight.astype(jnp.bfloat16)
    bb = bias.astype(jnp.bfloat16)
    out_bf = jax.block_until_ready(quantization_head_forward(xb, wb, bb))
    assert out_bf.dtype == jnp.bfloat16, out_bf.dtype
    ref_bf = _reference(xb.astype(jnp.float32), wb.astype(jnp.float32),
                        bb.astype(jnp.float32))
    assert jnp.allclose(out_bf.astype(jnp.float32), ref_bf, atol=1e-1, rtol=1e-1)

    print("KERNEL_OK")
</pallas_src>

<mosaic_0001>
module attributes {stable_mosaic.version = 11 : i64} {
  func.func @_qhead_kernel(%arg0: i32, %arg1: i32, %arg2: memref<2x32x16xf32, #tpu.memory_space<vmem>>, %arg3: memref<32x32xf32, #tpu.memory_space<vmem>>, %arg4: memref<1x32xf32, #tpu.memory_space<vmem>>, %arg5: memref<2x16x32xf32, #tpu.memory_space<vmem>>) attributes {dimension_semantics = [#tpu.dimension_semantics<parallel>, #tpu.dimension_semantics<parallel>], iteration_bounds = array<i64: 1, 1>, scalar_prefetch = 0 : i64, scratch_operands = 0 : i64, tpu.core_type = #tpu.core_type<tc>, window_params = [{transform_indices = @transform_0, window_bounds = array<i64: 2, 32, 16>}, {pipeline_mode = #tpu.pipeline_mode<synchronous>, transform_indices = @transform_1, window_bounds = array<i64: 32, 32>}, {pipeline_mode = #tpu.pipeline_mode<synchronous>, transform_indices = @transform_2, window_bounds = array<i64: 1, 32>}, {transform_indices = @transform_3, window_bounds = array<i64: 2, 16, 32>}]} {
    %c0 = arith.constant 0 : index
    %c0_0 = arith.constant 0 : index
    %0 = vector.load %arg3[%c0, %c0_0] : memref<32x32xf32, #tpu.memory_space<vmem>>, vector<32x32xf32>
    %c0_1 = arith.constant 0 : index
    %c0_2 = arith.constant 0 : index
    %1 = vector.load %arg4[%c0_1, %c0_2] : memref<1x32xf32, #tpu.memory_space<vmem>>, vector<1x32xf32>
    %c0_3 = arith.constant 0 : index
    %c0_4 = arith.constant 0 : index
    %c0_5 = arith.constant 0 : index
    %2 = vector.load %arg2[%c0_3, %c0_4, %c0_5] : memref<2x32x16xf32, #tpu.memory_space<vmem>>, vector<1x32x16xf32>
    %3 = vector.shape_cast %2 : vector<1x32x16xf32> to vector<32x16xf32>
    %cst = arith.constant dense<0.000000e+00> : vector<16x32xf32>
    %4 = tpu.matmul %3, %0, %cst {dimension_numbers = #tpu.dot_dimension_numbers<[0], [0], [1], [1], [0, 1, 1, 1], [], []>} : vector<32x16xf32>, vector<32x32xf32>, vector<16x32xf32> -> vector<16x32xf32>
    %5 = vector.broadcast %1 : vector<1x32xf32> to vector<16x32xf32>
    %6 = arith.addf %4, %5 : vector<16x32xf32>
    %c0_6 = arith.constant 0 : index
    %c0_7 = arith.constant 0 : index
    %c0_8 = arith.constant 0 : index
    %7 = vector.load %arg5[%c0_6, %c0_7, %c0_8] : memref<2x16x32xf32, #tpu.memory_space<vmem>>, vector<1x16x32xf32>
    %8 = vector.shape_cast %7 : vector<1x16x32xf32> to vector<16x32xf32>
    %9 = vector.shape_cast %6 : vector<16x32xf32> to vector<1x16x32xf32>
    tpu.vector_store %arg5[%c0_6, %c0_7, %c0_8], %9 {strides = array<i32>} : memref<2x16x32xf32, #tpu.memory_space<vmem>>, vector<1x16x32xf32>,
    %c1 = arith.constant 1 : index
    %c0_9 = arith.constant 0 : index
    %c0_10 = arith.constant 0 : index
    %10 = vector.load %arg2[%c1, %c0_9, %c0_10] : memref<2x32x16xf32, #tpu.memory_space<vmem>>, vector<1x32x16xf32>
    %11 = vector.shape_cast %10 : vector<1x32x16xf32> to vector<32x16xf32>
    %cst_11 = arith.constant dense<0.000000e+00> : vector<16x32xf32>
    %12 = tpu.matmul %11, %0, %cst_11 {dimension_numbers = #tpu.dot_dimension_numbers<[0], [0], [1], [1], [0, 1, 1, 1], [], []>} : vector<32x16xf32>, vector<32x32xf32>, vector<16x32xf32> -> vector<16x32xf32>
    %13 = vector.broadcast %1 : vector<1x32xf32> to vector<16x32xf32>
    %14 = arith.addf %12, %13 : vector<16x32xf32>
    %c1_12 = arith.constant 1 : index
    %c0_13 = arith.constant 0 : index
    %c0_14 = arith.constant 0 : index
    %15 = vector.load %arg5[%c1_12, %c0_13, %c0_14] : memref<2x16x32xf32, #tpu.memory_space<vmem>>, vector<1x16x32xf32>
    %16 = vector.shape_cast %15 : vector<1x16x32xf32> to vector<16x32xf32>
    %17 = vector.shape_cast %14 : vector<16x32xf32> to vector<1x16x32xf32>
    tpu.vector_store %arg5[%c1_12, %c0_13, %c0_14], %17 {strides = array<i32>} : memref<2x16x32xf32, #tpu.memory_space<vmem>>, vector<1x16x32xf32>,
    return
  }
  func.func @transform_0(%arg0: i32, %arg1: i32) -> (i32, i32, i32) {
    %c0_i32 = arith.constant 0 : i32
    %c0_i32_0 = arith.constant 0 : i32
    return %arg0, %c0_i32, %arg1 : i32, i32, i32
  }
  func.func @transform_1(%arg0: i32, %arg1: i32) -> (i32, i32) {
    %c0_i32 = arith.constant 0 : i32
    %c0_i32_0 = arith.constant 0 : i32
    %c0_i32_1 = arith.constant 0 : i32
    return %c0_i32, %c0_i32_0 : i32, i32
  }
  func.func @transform_2(%arg0: i32, %arg1: i32) -> (i32, i32) {
    %c0_i32 = arith.constant 0 : i32
    %c0_i32_0 = arith.constant 0 : i32
    %c0_i32_1 = arith.constant 0 : i32
    return %c0_i32, %c0_i32_0 : i32, i32
  }
  func.func @transform_3(%arg0: i32, %arg1: i32) -> (i32, i32, i32) {
    %c0_i32 = arith.constant 0 : i32
    %c0_i32_0 = arith.constant 0 : i32
    return %arg0, %arg1, %c0_i32 : i32, i32, i32
  }
}

</mosaic_0001>

<llo_original>
// kernel: quantization_head_forward.1
$region0: #{quantization_head_forward.1}
  #allocation0 [shape = 'u32[]', space=smem, size = 0x4, offset = 0x4, fixed_abs, tag = 'smem constant byte address 0x4 - core index']
  #allocation1 [shape = 'u32[144,128]{1,0:T(1,128)}', space=vmem, size = 0x12000, scoped, tag = 'internal scratch']
  %s0 = inlined_call_operand.vmem [shape: f32[2,32,16], index: 0, kind: input, shape index: {}]
  %s1 = inlined_call_operand.vmem [shape: f32[32,32], index: 1, kind: input, shape index: {}]
  %s2 = inlined_call_operand.vmem [shape: f32[1,32], index: 2, kind: input, shape index: {}]
  %s3 = inlined_call_operand.hbm [shape: f32[2,16,32], index: 3, kind: output, shape index: {}]
  %s4 = sld [smem:[#allocation0]]
  $region22: #{quantization_head_forward.1} parent=0
    _
  %s6 = ssub.s32 1, %s4
  %s7 = scalar_select 0, %s6, %s4
  $region1: #{quantization_head_forward.1} parent=0
    #allocation2 [shape = 'u8[16384]{0}', space=vmem, size = 0x4000, scoped, tag = 'output window, operand 0, single buffered']
    #allocation3 [shape = 's32[1]{0}', space=sflag, size = 0x4, scoped, tag = 'scoped memory for quantization_head_forward.1']
    %8 = vsyncpa [#allocation3], 0
    // Predicated region
    $region2: #{quantization_head_forward.1} parent=1 // pred_check
      _
    $region3: #{quantization_head_forward.1} parent=1 // pred_check_branch
      %10 = sbr.rel (0) target = $region5
    $region4: #{quantization_head_forward.1} parent=1 // pred_region
      _
    $region5: #{quantization_head_forward.1} parent=1 // pred_fallthru
      _
    // Predicated region
    $region6: #{quantization_head_forward.1} parent=1 // pred_check
      _
    $region7: #{quantization_head_forward.1} parent=1 // pred_check_branch
      %12 = sbr.rel (0) target = $region9
    $region8: #{quantization_head_forward.1} parent=1 // pred_region
      _
    $region9: #{quantization_head_forward.1} parent=1 // pred_fallthru
      _
    // Predicated region
    $region10: #{quantization_head_forward.1} parent=1 // pred_check
      _
    $region11: #{quantization_head_forward.1} parent=1 // pred_check_branch
      %14 = sbr.rel (0) target = $region13
    $region12: #{quantization_head_forward.1} parent=1 // pred_region
      _
    $region13: #{quantization_head_forward.1} parent=1 // pred_fallthru
      _
    %v15 = vld [vmem:[%s1] sm:$0xff]
    %v16 = vld [vmem:[%s1 + $0x8] sm:$0xff]
    %v17 = vld [vmem:[%s1 + $0x10] sm:$0xff]
    %v18 = vld [vmem:[%s1 + $0x18] sm:$0xff]
    %v19 = vld [vmem:[%s2] sm:$0x1]
    %v20 = vld [vmem:[%s0] sm:$0xff]
    %v21 = vld [vmem:[%s0 + $0x8] sm:$0xff]
    %v22 = vld [vmem:[%s0 + $0x10] sm:$0xff]
    %v23 = vld [vmem:[%s0 + $0x18] sm:$0xff]
    %v25 = vlaneseq
    %v26 = vshrl.u32 %v25, 7
    %v27 = vsub.s32 0, %v26
    %v28 = vrot.slane %v19, %v27
    %30 = vxpose.xlu0.b32.start [1/16] %v20, 128
    %31 = vxpose.xlu0.b32.cont [2/16] %v21, 128
    %32 = vxpose.xlu0.b32.cont [3/16] %v22, 128
    %33 = vxpose.xlu0.b32.cont [4/16] %v23, 128
    %34 = vxpose.xlu0.b32.cont [5/16] 0.0, 128
    %35 = vxpose.xlu0.b32.cont [6/16] 0.0, 128
    %36 = vxpose.xlu0.b32.cont [7/16] 0.0, 128
    %37 = vxpose.xlu0.b32.cont [8/16] 0.0, 128
    %38 = vxpose.xlu0.b32.cont [9/16] 0.0, 128
    %39 = vxpose.xlu0.b32.cont [10/16] 0.0, 128
    %40 = vxpose.xlu0.b32.cont [11/16] 0.0, 128
    %41 = vxpose.xlu0.b32.cont [12/16] 0.0, 128
    %42 = vxpose.xlu0.b32.cont [13/16] 0.0, 128
    %43 = vxpose.xlu0.b32.cont [14/16] 0.0, 128
    %44 = vxpose.xlu0.b32.cont [15/16] 0.0, 128
    %45 = vxpose.xlu0.b32.end [16/16] 0.0, 128
    %v46 = vpop.trf.xlu0
    %v47 = vpop.trf.xlu0
    %v48 = vpop.trf.xlu0
    %v49 = vpop.trf.xlu0
    %v50 = vpop.trf.xlu0
    %v51 = vpop.trf.xlu0
    %v52 = vpop.trf.xlu0
    %v53 = vpop.trf.xlu0
    %v54 = vpop.trf.xlu0
    %v55 = vpop.trf.xlu0
    %v56 = vpop.trf.xlu0
    %v57 = vpop.trf.xlu0
    %v58 = vpop.trf.xlu0
    %v59 = vpop.trf.xlu0
    %v60 = vpop.trf.xlu0
    %v61 = vpop.trf.xlu0
    %vm62 = vcmask 261120
    %v64 = vsel %vm62, %v46, 0
    %v67 = vsel %vm62, %v47, 0
    %69 = vmatprep.subr.mxu0 0.0
    %70 = vmatpush1.msra.mxu0 0.0
    %71 = vmatprep.subr.mxu0 0.0
    %72 = vmatpush1.msra.mxu0 0.0
    %73 = vmatprep.subr.mxu0 0.0
    %74 = vmatpush1.msra.mxu0 0.0
    %75 = vmatprep.subr.mxu0 0.0
    %76 = vmatpush1.msra.mxu0 0.0
    %77 = vmatprep.subr.mxu0 0.0
    %78 = vmatpush1.msra.mxu0 0.0
    %79 = vmatprep.subr.mxu0 0.0
    %80 = vmatpush1.msra.mxu0 0.0
    %81 = vmatprep.subr.mxu0 0.0
    %82 = vmatpush1.msra.mxu0 0.0
    %83 = vmatprep.subr.mxu0 0.0
    %84 = vmatpush1.msra.mxu0 0.0
    %85 = vmatprep.subr.mxu0 0.0
    %86 = vmatpush1.msra.mxu0 0.0
    %87 = vmatprep.subr.mxu0 0.0
    %88 = vmatpush1.msra.mxu0 0.0
    %89 = vmatprep.subr.mxu0 0.0
    %90 = vmatpush1.msra.mxu0 0.0
    %91 = vmatprep.subr.mxu0 0.0
    %92 = vmatpush1.msra.mxu0 0.0
    %93 = vmatprep.subr.mxu0 0.0
    %94 = vmatpush1.msra.mxu0 %v18
    %95 = vmatprep.subr.mxu0 0.0
    %96 = vmatpush1.msra.mxu0 %v17
    %97 = vmatprep.subr.mxu0 0.0
    %98 = vmatpush1.msra.mxu0 %v16
    %99 = vmatprep.subr.mxu0 0.0
    %100 = vmatpush1.msra.mxu0 %v15
    %101 = vmatprep.subr.mxu0 0.0
    %102 = vmatpush2.msra.mxu0 0.0
    %103 = vmatprep.subr.mxu0 0.0
    %104 = vmatpush2.msra.mxu0 0.0
    %105 = vmatprep.subr.mxu0 0.0
    %106 = vmatpush2.msra.mxu0 0.0
    %107 = vmatprep.subr.mxu0 0.0
    %108 = vmatpush2.msra.mxu0 0.0
    %109 = vmatprep.subr.mxu0 0.0
    %110 = vmatpush2.msra.mxu0 0.0
    %111 = vmatprep.subr.mxu0 0.0
    %112 = vmatpush2.msra.mxu0 0.0
    %113 = vmatprep.subr.mxu0 0.0
    %114 = vmatpush2.msra.mxu0 0.0
    %115 = vmatprep.subr.mxu0 0.0
    %116 = vmatpush2.msra.mxu0 0.0
    %117 = vmatprep.subr.mxu0 0.0
    %118 = vmatpush2.msra.mxu0 0.0
    %119 = vmatprep.subr.mxu0 0.0
    %120 = vmatpush2.msra.mxu0 0.0
    %121 = vmatprep.subr.mxu0 0.0
    %122 = vmatpush2.msra.mxu0 0.0
    %123 = vmatprep.subr.mxu0 0.0
    %124 = vmatpush2.msra.mxu0 0.0
    %125 = vmatprep.subr.mxu0 0.0
    %126 = vmatpush2.msra.mxu0 0.0
    %127 = vmatprep.subr.mxu0 0.0
    %128 = vmatpush2.msra.mxu0 0.0
    %129 = vmatprep.subr.mxu0 0.0
    %130 = vmatpush2.msra.mxu0 0.0
    %131 = vmatprep.subr.mxu0 0.0
    %132 = vmatpush2.msra.mxu0 0.0
    %133 = vmatprep.mubr.f32.mxu0 0.0
    %134 = vmatmul.mubr.f32.gmra.mxu0 %v64
    %v135 = vpop.f32.mrf.mxu0
    %v136 = vadd.f32 %v28, %v135
    %v137 = vpop.f32.mrf.mxu0
    %138 = vmatprep.mubr.f32.mxu0 0.0
    %139 = vmatmul.mubr.f32.gmra.mxu0 %v67
    %v140 = vpop.f32.mrf.mxu0
    %v141 = vadd.f32 %v28, %v140
    %v142 = vpop.f32.mrf.mxu0
    %143 = vdwg.mxu0
    %144 = vst.msk [vmem:[#allocation2] sm:$0xff] %vm62, %v136
    %145 = vst.msk [vmem:[#allocation2 + $0x8] sm:$0xff] %vm62, %v141
    %s146 = scalar_lea.vmem %s0, 32
    %v147 = vld [vmem:[%s146] sm:$0xff]
    %v148 = vld [vmem:[%s146 + $0x8] sm:$0xff]
    %v149 = vld [vmem:[%s146 + $0x10] sm:$0xff]
    %v150 = vld [vmem:[%s146 + $0x18] sm:$0xff]
    %151 = vxpose.xlu0.b32.start [1/16] %v147, 128
    %152 = vxpose.xlu0.b32.cont [2/16] %v148, 128
    %153 = vxpose.xlu0.b32.cont [3/16] %v149, 128
    %154 = vxpose.xlu0.b32.cont [4/16] %v150, 128
    %155 = vxpose.xlu0.b32.cont [5/16] 0.0, 128
    %156 = vxpose.xlu0.b32.cont [6/16] 0.0, 128
    %157 = vxpose.xlu0.b32.cont [7/16] 0.0, 128
    %158 = vxpose.xlu0.b32.cont [8/16] 0.0, 128
    %159 = vxpose.xlu0.b32.cont [9/16] 0.0, 128
    %160 = vxpose.xlu0.b32.cont [10/16] 0.0, 128
    %161 = vxpose.xlu0.b32.cont [11/16] 0.0, 128
    %162 = vxpose.xlu0.b32.cont [12/16] 0.0, 128
    %163 = vxpose.xlu0.b32.cont [13/16] 0.0, 128
    %164 = vxpose.xlu0.b32.cont [14/16] 0.0, 128
    %165 = vxpose.xlu0.b32.cont [15/16] 0.0, 128
    %166 = vxpose.xlu0.b32.end [16/16] 0.0, 128
    %v167 = vpop.trf.xlu0
    %v168 = vpop.trf.xlu0
    %v169 = vpop.trf.xlu0
    %v170 = vpop.trf.xlu0
    %v171 = vpop.trf.xlu0
    %v172 = vpop.trf.xlu0
    %v173 = vpop.trf.xlu0
    %v174 = vpop.trf.xlu0
    %v175 = vpop.trf.xlu0
    %v176 = vpop.trf.xlu0
    %v177 = vpop.trf.xlu0
    %v178 = vpop.trf.xlu0
    %v179 = vpop.trf.xlu0
    %v180 = vpop.trf.xlu0
    %v181 = vpop.trf.xlu0
    %v182 = vpop.trf.xlu0
    %v184 = vsel %vm62, %v167, 0
    %v187 = vsel %vm62, %v168, 0
    %189 = vmatprep.subr.mxu0 0.0
    %190 = vmatpush1.msra.mxu0 0.0
    %191 = vmatprep.subr.mxu0 0.0
    %192 = vmatpush1.msra.mxu0 0.0
    %193 = vmatprep.subr.mxu0 0.0
    %194 = vmatpush1.msra.mxu0 0.0
    %195 = vmatprep.subr.mxu0 0.0
    %196 = vmatpush1.msra.mxu0 0.0
    %197 = vmatprep.subr.mxu0 0.0
    %198 = vmatpush1.msra.mxu0 0.0
    %199 = vmatprep.subr.mxu0 0.0
    %200 = vmatpush1.msra.mxu0 0.0
    %201 = vmatprep.subr.mxu0 0.0
    %202 = vmatpush1.msra.mxu0 0.0
    %203 = vmatprep.subr.mxu0 0.0
    %204 = vmatpush1.msra.mxu0 0.0
    %205 = vmatprep.subr.mxu0 0.0
    %206 = vmatpush1.msra.mxu0 0.0
    %207 = vmatprep.subr.mxu0 0.0
    %208 = vmatpush1.msra.mxu0 0.0
    %209 = vmatprep.subr.mxu0 0.0
    %210 = vmatpush1.msra.mxu0 0.0
    %211 = vmatprep.subr.mxu0 0.0
    %212 = vmatpush1.msra.mxu0 0.0
    %213 = vmatprep.subr.mxu0 0.0
    %214 = vmatpush1.msra.mxu0 %v18
    %215 = vmatprep.subr.mxu0 0.0
    %216 = vmatpush1.msra.mxu0 %v17
    %217 = vmatprep.subr.mxu0 0.0
    %218 = vmatpush1.msra.mxu0 %v16
    %219 = vmatprep.subr.mxu0 0.0
    %220 = vmatpush1.msra.mxu0 %v15
    %221 = vmatprep.subr.mxu0 0.0
    %222 = vmatpush2.msra.mxu0 0.0
    %223 = vmatprep.subr.mxu0 0.0
    %224 = vmatpush2.msra.mxu0 0.0
    %225 = vmatprep.subr.mxu0 0.0
    %226 = vmatpush2.msra.mxu0 0.0
    %227 = vmatprep.subr.mxu0 0.0
    %228 = vmatpush2.msra.mxu0 0.0
    %229 = vmatprep.subr.mxu0 0.0
    %230 = vmatpush2.msra.mxu0 0.0
    %231 = vmatprep.subr.mxu0 0.0
    %232 = vmatpush2.msra.mxu0 0.0
    %233 = vmatprep.subr.mxu0 0.0
    %234 = vmatpush2.msra.mxu0 0.0
    %235 = vmatprep.subr.mxu0 0.0
    %236 = vmatpush2.msra.mxu0 0.0
    %237 = vmatprep.subr.mxu0 0.0
    %238 = vmatpush2.msra.mxu0 0.0
    %239 = vmatprep.subr.mxu0 0.0
    %240 = vmatpush2.msra.mxu0 0.0
    %241 = vmatprep.subr.mxu0 0.0
    %242 = vmatpush2.msra.mxu0 0.0
    %243 = vmatprep.subr.mxu0 0.0
    %244 = vmatpush2.msra.mxu0 0.0
    %245 = vmatprep.subr.mxu0 0.0
    %246 = vmatpush2.msra.mxu0 0.0
    %247 = vmatprep.subr.mxu0 0.0
    %248 = vmatpush2.msra.mxu0 0.0
    %249 = vmatprep.subr.mxu0 0.0
    %250 = vmatpush2.msra.mxu0 0.0
    %251 = vmatprep.subr.mxu0 0.0
    %252 = vmatpush2.msra.mxu0 0.0
    %253 = vmatprep.mubr.f32.mxu0 0.0
    %254 = vmatmul.mubr.f32.gmra.mxu0 %v184
    %v255 = vpop.f32.mrf.mxu0
    %v256 = vadd.f32 %v28, %v255
    %v257 = vpop.f32.mrf.mxu0
    %258 = vmatprep.mubr.f32.mxu0 0.0
    %259 = vmatmul.mubr.f32.gmra.mxu0 %v187
    %v260 = vpop.f32.mrf.mxu0
    %v261 = vadd.f32 %v28, %v260
    %v262 = vpop.f32.mrf.mxu0
    %263 = vdwg.mxu0
    %s264 = scalar_lea.vmem [#allocation2], 16
    %265 = vst.msk [vmem:[%s264] sm:$0xff] %vm62, %v256
    %266 = vst.msk [vmem:[%s264 + $0x8] sm:$0xff] %vm62, %v261
    // Predicated region
    $region14: #{quantization_head_forward.1} parent=1 // pred_check
      _
    $region15: #{quantization_head_forward.1} parent=1 // pred_check_branch
      %268 = sbr.rel (0) target = $region17
    $region16: #{quantization_head_forward.1} parent=1 // pred_region
      %s270 = ssub.s32 512, 512
      %271 = vsyncadd [#allocation3], %s270
      %s272 = sshll.u32 [#allocation2], 4
      %s273 = int_to_ptr.vmem [resolvable:$true] %s272
      %278 = dma.vmem_to_hbm [thread:$0]  %s273, 512, %s3, [#allocation3], 128, 128, 8
    $region17: #{quantization_head_forward.1} parent=1 // pred_fallthru
      _
    // Predicated region
    $region18: #{quantization_head_forward.1} parent=1 // pred_check
      _
    $region19: #{quantization_head_forward.1} parent=1 // pred_check_branch
      %280 = sbr.rel (0) target = $region21
    $region20: #{quantization_head_forward.1} parent=1 // pred_region
      %281 = dma.done [#allocation3], 512
    $region21: #{quantization_head_forward.1} parent=1 // pred_fallthru
      _
    %282 = vsyncpa [#allocation3], 1

</llo_original>
